<compile_context>
chip_gen: v5e
topology: v5e:2x2
jax: 0.10.0
libtpu: 0.0.40
codegen_flags: <defaults>
</compile_context>

<pallas_src>
import functools
import math

import jax
import jax.numpy as jnp
from jax.experimental import pallas as pl
from jax.experimental.pallas import tpu as pltpu

_LANES = 128


def _conv_bn_relu_kernel(x_ref, wb_ref, shift_ref, o_ref, xpad_ref, *,
                         k, s, d, p, h, h_out, in_lanes, out_lanes):
    """One grid step = one whole image.

    x_ref:     (1, H, W*Cin)          unpadded image, (W, Cin) fused, bf16/f32
    wb_ref:    (k, W*Cin, Wout*Cout)  banded weights (BN scale folded in)
    shift_ref: (1, Wout*Cout)         folded BN shift (f32), tiled along Wout
    o_ref:     (1, Hout, Wout*Cout)   lane-dense f32 output
    xpad_ref:  (H+2p, W*Cin)          f32 VMEM scratch, zero-padded in H only
    """
    # H-direction zero padding (W padding is folded into wb).  One image per
    # grid step, so this runs exactly once per image.
    if p > 0:
        xpad_ref[pl.ds(0, p), :] = jnp.zeros((p, in_lanes), jnp.float32)
        xpad_ref[pl.ds(h + p, p), :] = jnp.zeros((p, in_lanes), jnp.float32)
    xpad_ref[pl.ds(p, h), :] = x_ref[0].astype(jnp.float32)

    acc = jnp.zeros((h_out, out_lanes), jnp.float32)
    # Static loop over the k kernel rows; each tap is one contiguous
    # (Hout, W*Cin) x (W*Cin, Wout*Cout) MXU matmul accumulated in f32.
    for kh in range(k):
        start = kh * d                       # static offset: whole image/step
        if s == 1:
            xs = xpad_ref[pl.ds(start, h_out), :]
        else:
            # TODO(synk): for s > 1 prefer pre-split stride-phase planes in the
            # wrapper; this strided sublane read path is not exercised here.
            xs = xpad_ref[pl.ds(start, h_out, s), :]
        acc += jnp.dot(xs.astype(wb_ref.dtype), wb_ref[kh],
                       preferred_element_type=jnp.float32)

    # Folded BN shift + ReLU in f32; single lane-dense (128-wide) store.
    y = jnp.maximum(acc + shift_ref[...], 0.0)
    o_ref[0] = y.astype(o_ref.dtype)


def _vmem_budget_bytes():
    """Conservative per-step VMEM budget (generation-aware)."""
    try:
        cap = pltpu.get_tpu_info().vmem_capacity_bytes
    except Exception:                       # off-TPU tracing / older runtimes
        cap = 64 * 1024 * 1024              # v7x floor: 64 MiB per TensorCore
    # Stay well under the default scoped limit so no vmem flag is needed.
    return min(cap // 4, 16 * 1024 * 1024)


def prepare_convbnrelu_params(weight_oihw, gamma, beta, running_mean,
                              running_var, *, h, w, k, s, p, d=1, eps=1e-5,
                              compute_dtype=jnp.bfloat16):
    """One-time (weight-load-time) prep: fold BN, build banded weights.

    Hoisted out of the per-call forward path so the einsum/tile below are not
    re-executed every forward.
    """
    c_out, c_in = int(weight_oihw.shape[0]), int(weight_oihw.shape[1])
    h_out = (h + 2 * p - d * (k - 1) - 1) // s + 1
    w_out = (w + 2 * p - d * (k - 1) - 1) // s + 1

    # Pad Cin so in_lanes = W*Cin_pad is a multiple of 128 (lane-dense scratch
    # traffic; on v5e it exactly fills the 128-deep MXU contraction).
    m = _LANES // math.gcd(w, _LANES)
    c_in_pad = ((c_in + m - 1) // m) * m
    if c_in_pad > max(2 * c_in, c_in + 8):  # don't blow up for awkward widths
        c_in_pad = c_in
    in_lanes = w * c_in_pad
    out_lanes = w_out * c_out

    # Fold eval-mode BN: scale into the conv weights, shift stays for epilogue.
    inv_std = jax.lax.rsqrt(running_var.astype(jnp.float32) + eps)
    scale = gamma.astype(jnp.float32) * inv_std
    shift = beta.astype(jnp.float32) - running_mean.astype(jnp.float32) * scale

    w_hwio = jnp.transpose(weight_oihw, (2, 3, 1, 0)).astype(jnp.float32)
    w_fold = w_hwio * scale[None, None, None, :]          # (k, k, Cin, Cout)
    if c_in_pad != c_in:
        w_fold = jnp.pad(w_fold,
                         ((0, 0), (0, 0), (0, c_in_pad - c_in), (0, 0)))

    # Banded weight matrix ("im2col of the weights"): for each kernel row kh,
    #   wb[kh, wi*Cin + ci, wo*Cout + co] = w_fold[kh, kw, ci, co]
    # where wi = wo*s + kw*d - p; out-of-range wi (W zero padding) is dropped.
    wo_idx = jnp.arange(w_out)
    kw_idx = jnp.arange(k)
    wi_src = wo_idx[None, :] * s + kw_idx[:, None] * d - p       # (k, Wout)
    sel = (jnp.arange(w)[None, :, None] == wi_src[:, None, :])   # (k, W, Wout)
    wb = jnp.einsum('xab,hxio->haibo', sel.astype(jnp.float32), w_fold)
    wb = wb.reshape(k, in_lanes, out_lanes).astype(compute_dtype)

    # Shift broadcast along Wout so the epilogue add is a plain lane add.
    shift_row = jnp.tile(shift, w_out).reshape(1, out_lanes)     # f32

    # Generation-aware VMEM budget guard (wb grows with W*Cin * Wout*Cout).
    itemsize = jnp.dtype(compute_dtype).itemsize
    resident = (2 * h * in_lanes * itemsize              # image (dbl-buffered)
                + 2 * k * in_lanes * out_lanes * itemsize  # wb (conservative)
                + 2 * h_out * out_lanes * 4              # f32 output block
                + (h + 2 * p) * in_lanes * 4             # f32 padded scratch
                + 2 * out_lanes * 4)                     # shift row
    if resident > _vmem_budget_bytes():
        # TODO(synk): switch to a Cout-tiled im2col matmul path when the
        # banded weights no longer fit VMEM (crossover is ~2x lower on v7x,
        # which has 64 MiB vs 128 MiB of VMEM per TensorCore).
        raise NotImplementedError(
            "convbnrelu banded-weight path exceeds the VMEM budget for this "
            "shape; use a Cout-tiled im2col matmul instead.")

    meta = dict(h=h, w=w, k=k, s=s, p=p, d=d, h_out=h_out, w_out=w_out,
                c_in=c_in, c_in_pad=c_in_pad, c_out=c_out,
                in_lanes=in_lanes, out_lanes=out_lanes,
                compute_dtype=compute_dtype)
    return wb, shift_row, meta


def convbnrelu_forward(x_nchw, wb, shift_row, meta):
    """Conv2d(bias=False) + BatchNorm2d(eval) + ReLU with prepared params.

    x_nchw: (N, Cin, H, W)  ->  returns (N, Cout, Hout, Wout)
    """
    n = x_nchw.shape[0]
    h, w, k, s, p, d = (meta["h"], meta["w"], meta["k"], meta["s"],
                        meta["p"], meta["d"])
    h_out, w_out = meta["h_out"], meta["w_out"]
    c_in, c_in_pad, c_out = meta["c_in"], meta["c_in_pad"], meta["c_out"]
    in_lanes, out_lanes = meta["in_lanes"], meta["out_lanes"]
    compute_dtype = meta["compute_dtype"]

    # --- boundary glue (plain JAX) ------------------------------------------
    # TODO(synk): if the surrounding model can run NHWC end-to-end, drop the
    # NCHW<->NHWC transposes here and at the return -- at these sizes the two
    # relayouts cost about as much as the Pallas call itself.
    x_rows = jnp.transpose(x_nchw, (0, 2, 3, 1)).astype(compute_dtype)
    if c_in_pad != c_in:
        x_rows = jnp.pad(x_rows,
                         ((0, 0), (0, 0), (0, 0), (0, c_in_pad - c_in)))
    x_rows = x_rows.reshape(n, h, in_lanes)

    # --- Pallas hot path -----------------------------------------------------
    kernel = functools.partial(
        _conv_bn_relu_kernel, k=k, s=s, d=d, p=p, h=h, h_out=h_out,
        in_lanes=in_lanes, out_lanes=out_lanes)

    out_rows = pl.pallas_call(
        kernel,
        out_shape=jax.ShapeDtypeStruct((n, h_out, out_lanes), jnp.float32),
        grid_spec=pltpu.PrefetchScalarGridSpec(
            num_scalar_prefetch=0,
            grid=(n,),                            # one whole image per step
            in_specs=[
                pl.BlockSpec((1, h, in_lanes), lambda i: (i, 0, 0)),
                # Constant index_map: wb is DMA'd once and stays resident.
                pl.BlockSpec((k, in_lanes, out_lanes), lambda i: (0, 0, 0)),
                pl.BlockSpec((1, out_lanes), lambda i: (0, 0)),
            ],
            out_specs=pl.BlockSpec((1, h_out, out_lanes), lambda i: (i, 0, 0)),
            scratch_shapes=[pltpu.VMEM((h + 2 * p, in_lanes), jnp.float32)],
        ),
        compiler_params=pltpu.CompilerParams(
            # Batch axis 'parallel': v7x megacore shards images across its two
            # TensorCores; single-TC v5e/v6e unaffected.
            dimension_semantics=("parallel",)),
    )(x_rows, wb, shift_row)

    out = out_rows.reshape(n, h_out, w_out, c_out)
    return jnp.transpose(out, (0, 3, 1, 2))


def _reference(x_nchw, weight_oihw, gamma, beta, running_mean, running_var,
               *, k, s, p, d=1, eps=1e-5, compute_dtype=jnp.float32):
    """XLA reference with the same BN fold and operand precision."""
    inv_std = jax.lax.rsqrt(running_var.astype(jnp.float32) + eps)
    scale = gamma.astype(jnp.float32) * inv_std
    shift = beta.astype(jnp.float32) - running_mean.astype(jnp.float32) * scale
    x_nhwc = jnp.transpose(x_nchw, (0, 2, 3, 1)).astype(compute_dtype)
    w_hwio = (jnp.transpose(weight_oihw, (2, 3, 1, 0)).astype(jnp.float32)
              * scale[None, None, None, :]).astype(compute_dtype)
    y = jax.lax.conv_general_dilated(
        x_nhwc, w_hwio, window_strides=(s, s), padding=[(p, p), (p, p)],
        rhs_dilation=(d, d), dimension_numbers=("NHWC", "HWIO", "NHWC"),
        preferred_element_type=jnp.float32)
    y = jnp.maximum(y + shift[None, None, None, :], 0.0)
    return jnp.transpose(y, (0, 3, 1, 2))


if __name__ == "__main__":
    # Module config: convbnrelu(in_channel=4, out_channel=8, k=3, s=1, p=1)
    N, CIN, COUT, H, W = 2, 4, 8, 16, 16
    K, S, P, D = 3, 1, 1, 1

    key = jax.random.PRNGKey(0)
    kx, kw, kg, kb, km, kv = jax.random.split(key, 6)

    x = jax.random.normal(kx, (N, CIN, H, W), dtype=jnp.float32)
    fan_in = CIN * K * K
    weight = jax.random.normal(kw, (COUT, CIN, K, K), jnp.float32) / jnp.sqrt(fan_in)
    gamma = 1.0 + 0.1 * jax.random.normal(kg, (COUT,), jnp.float32)
    beta = 0.1 * jax.random.normal(kb, (COUT,), jnp.float32)
    running_mean = 0.1 * jax.random.normal(km, (COUT,), jnp.float32)
    running_var = 1.0 + 0.1 * jax.random.uniform(kv, (COUT,), jnp.float32)

    # --- default bf16-operand path (v6e/v7x-native MXU) ---------------------
    wb16, shift16, meta16 = prepare_convbnrelu_params(
        weight, gamma, beta, running_mean, running_var,
        h=H, w=W, k=K, s=S, p=P, d=D, compute_dtype=jnp.bfloat16)
    out16 = jax.block_until_ready(convbnrelu_forward(x, wb16, shift16, meta16))
    assert out16.shape == (N, COUT, H, W)
    ref16 = _reference(x, weight, gamma, beta, running_mean, running_var,
                       k=K, s=S, p=P, d=D, compute_dtype=jnp.bfloat16)
    assert jnp.allclose(out16, ref16, atol=1e-2, rtol=1e-2), "bf16 mismatch"

    # --- f32-operand path (tight-tolerance numerical check) -----------------
    wb32, shift32, meta32 = prepare_convbnrelu_params(
        weight, gamma, beta, running_mean, running_var,
        h=H, w=W, k=K, s=S, p=P, d=D, compute_dtype=jnp.float32)
    out32 = jax.block_until_ready(convbnrelu_forward(x, wb32, shift32, meta32))
    ref32 = _reference(x, weight, gamma, beta, running_mean, running_var,
                       k=K, s=S, p=P, d=D, compute_dtype=jnp.float32)
    assert jnp.allclose(out32, ref32, atol=1e-4, rtol=1e-4), "f32 mismatch"

    print("KERNEL_OK")
</pallas_src>

<mosaic_0001>
module attributes {stable_mosaic.version = 11 : i64} {
  func.func @_conv_bn_relu_kernel(%arg0: i32, %arg1: memref<1x16x128xbf16, #tpu.memory_space<vmem>>, %arg2: memref<3x128x128xbf16, #tpu.memory_space<vmem>>, %arg3: memref<1x128xf32, #tpu.memory_space<vmem>>, %arg4: memref<1x16x128xf32, #tpu.memory_space<vmem>>, %arg5: memref<18x128xf32, #tpu.memory_space<vmem>>) attributes {dimension_semantics = [#tpu.dimension_semantics<parallel>], iteration_bounds = array<i64: 2>, scalar_prefetch = 0 : i64, scratch_operands = 1 : i64, tpu.core_type = #tpu.core_type<tc>, window_params = [{transform_indices = @transform_0, window_bounds = array<i64: 1, 16, 128>}, {pipeline_mode = #tpu.pipeline_mode<synchronous>, transform_indices = @transform_1, window_bounds = array<i64: 3, 128, 128>}, {pipeline_mode = #tpu.pipeline_mode<synchronous>, transform_indices = @transform_2, window_bounds = array<i64: 1, 128>}, {transform_indices = @transform_3, window_bounds = array<i64: 1, 16, 128>}]} {
    %cst = arith.constant 0.000000e+00 : f32
    %0 = vector.broadcast %cst : f32 to vector<1x128xf32>
    %c0 = arith.constant 0 : index
    %c0_0 = arith.constant 0 : index
    %1 = vector.load %arg5[%c0, %c0_0] : memref<18x128xf32, #tpu.memory_space<vmem>>, vector<1x128xf32>
    tpu.vector_store %arg5[%c0, %c0_0], %0 {strides = array<i32>} : memref<18x128xf32, #tpu.memory_space<vmem>>, vector<1x128xf32>,
    %cst_1 = arith.constant 0.000000e+00 : f32
    %2 = vector.broadcast %cst_1 : f32 to vector<1x128xf32>
    %c17 = arith.constant 17 : index
    %c0_2 = arith.constant 0 : index
    %3 = vector.load %arg5[%c17, %c0_2] : memref<18x128xf32, #tpu.memory_space<vmem>>, vector<1x128xf32>
    tpu.vector_store %arg5[%c17, %c0_2], %2 {strides = array<i32>} : memref<18x128xf32, #tpu.memory_space<vmem>>, vector<1x128xf32>,
    %c0_3 = arith.constant 0 : index
    %c0_4 = arith.constant 0 : index
    %c0_5 = arith.constant 0 : index
    %4 = vector.load %arg1[%c0_3, %c0_4, %c0_5] : memref<1x16x128xbf16, #tpu.memory_space<vmem>>, vector<1x16x128xbf16>
    %5 = vector.shape_cast %4 : vector<1x16x128xbf16> to vector<16x128xbf16>
    %6 = arith.extf %5 : vector<16x128xbf16> to vector<16x128xf32>
    %c1 = arith.constant 1 : index
    %c0_6 = arith.constant 0 : index
    %7 = vector.load %arg5[%c1, %c0_6] : memref<18x128xf32, #tpu.memory_space<vmem>>, vector<16x128xf32>
    tpu.vector_store %arg5[%c1, %c0_6], %6 {strides = array<i32>} : memref<18x128xf32, #tpu.memory_space<vmem>>, vector<16x128xf32>,
    %cst_7 = arith.constant 0.000000e+00 : f32
    %8 = vector.broadcast %cst_7 : f32 to vector<16x128xf32>
    %c0_8 = arith.constant 0 : index
    %c0_9 = arith.constant 0 : index
    %9 = vector.load %arg5[%c0_8, %c0_9] : memref<18x128xf32, #tpu.memory_space<vmem>>, vector<16x128xf32>
    %10 = arith.truncf %9 : vector<16x128xf32> to vector<16x128xbf16>
    %c0_10 = arith.constant 0 : index
    %c0_11 = arith.constant 0 : index
    %c0_12 = arith.constant 0 : index
    %11 = vector.load %arg2[%c0_10, %c0_11, %c0_12] : memref<3x128x128xbf16, #tpu.memory_space<vmem>>, vector<1x128x128xbf16>
    %12 = vector.shape_cast %11 : vector<1x128x128xbf16> to vector<128x128xbf16>
    %cst_13 = arith.constant dense<0.000000e+00> : vector<16x128xf32>
    %13 = tpu.matmul %10, %12, %cst_13 {dimension_numbers = #tpu.dot_dimension_numbers<[1], [0], [0], [1], [0, 0, 1, 1], [], []>} : vector<16x128xbf16>, vector<128x128xbf16>, vector<16x128xf32> -> vector<16x128xf32>
    %14 = arith.addf %8, %13 : vector<16x128xf32>
    %c1_14 = arith.constant 1 : index
    %c0_15 = arith.constant 0 : index
    %15 = vector.load %arg5[%c1_14, %c0_15] : memref<18x128xf32, #tpu.memory_space<vmem>>, vector<16x128xf32>
    %16 = arith.truncf %15 : vector<16x128xf32> to vector<16x128xbf16>
    %c1_16 = arith.constant 1 : index
    %c0_17 = arith.constant 0 : index
    %c0_18 = arith.constant 0 : index
    %17 = vector.load %arg2[%c1_16, %c0_17, %c0_18] : memref<3x128x128xbf16, #tpu.memory_space<vmem>>, vector<1x128x128xbf16>
    %18 = vector.shape_cast %17 : vector<1x128x128xbf16> to vector<128x128xbf16>
    %cst_19 = arith.constant dense<0.000000e+00> : vector<16x128xf32>
    %19 = tpu.matmul %16, %18, %cst_19 {dimension_numbers = #tpu.dot_dimension_numbers<[1], [0], [0], [1], [0, 0, 1, 1], [], []>} : vector<16x128xbf16>, vector<128x128xbf16>, vector<16x128xf32> -> vector<16x128xf32>
    %20 = arith.addf %14, %19 : vector<16x128xf32>
    %c2 = arith.constant 2 : index
    %c0_20 = arith.constant 0 : index
    %21 = vector.load %arg5[%c2, %c0_20] : memref<18x128xf32, #tpu.memory_space<vmem>>, vector<16x128xf32>
    %22 = arith.truncf %21 : vector<16x128xf32> to vector<16x128xbf16>
    %c2_21 = arith.constant 2 : index
    %c0_22 = arith.constant 0 : index
    %c0_23 = arith.constant 0 : index
    %23 = vector.load %arg2[%c2_21, %c0_22, %c0_23] : memref<3x128x128xbf16, #tpu.memory_space<vmem>>, vector<1x128x128xbf16>
    %24 = vector.shape_cast %23 : vector<1x128x128xbf16> to vector<128x128xbf16>
    %cst_24 = arith.constant dense<0.000000e+00> : vector<16x128xf32>
    %25 = tpu.matmul %22, %24, %cst_24 {dimension_numbers = #tpu.dot_dimension_numbers<[1], [0], [0], [1], [0, 0, 1, 1], [], []>} : vector<16x128xbf16>, vector<128x128xbf16>, vector<16x128xf32> -> vector<16x128xf32>
    %26 = arith.addf %20, %25 : vector<16x128xf32>
    %c0_25 = arith.constant 0 : index
    %c0_26 = arith.constant 0 : index
    %27 = vector.load %arg3[%c0_25, %c0_26] : memref<1x128xf32, #tpu.memory_space<vmem>>, vector<1x128xf32>
    %28 = vector.broadcast %27 : vector<1x128xf32> to vector<16x128xf32>
    %29 = arith.addf %26, %28 : vector<16x128xf32>
    %cst_27 = arith.constant 0.000000e+00 : f32
    %30 = vector.broadcast %cst_27 : f32 to vector<16x128xf32>
    %31 = arith.maximumf %29, %30 : vector<16x128xf32>
    %c0_28 = arith.constant 0 : index
    %c0_29 = arith.constant 0 : index
    %c0_30 = arith.constant 0 : index
    %32 = vector.load %arg4[%c0_28, %c0_29, %c0_30] : memref<1x16x128xf32, #tpu.memory_space<vmem>>, vector<1x16x128xf32>
    %33 = vector.shape_cast %32 : vector<1x16x128xf32> to vector<16x128xf32>
    %34 = vector.shape_cast %31 : vector<16x128xf32> to vector<1x16x128xf32>
    tpu.vector_store %arg4[%c0_28, %c0_29, %c0_30], %34 {strides = array<i32>} : memref<1x16x128xf32, #tpu.memory_space<vmem>>, vector<1x16x128xf32>,
    return
  }
  func.func @transform_0(%arg0: i32) -> (i32, i32, i32) {
    %c0_i32 = arith.constant 0 : i32
    %c0_i32_0 = arith.constant 0 : i32
    %c0_i32_1 = arith.constant 0 : i32
    return %arg0, %c0_i32, %c0_i32_0 : i32, i32, i32
  }
  func.func @transform_1(%arg0: i32) -> (i32, i32, i32) {
    %c0_i32 = arith.constant 0 : i32
    %c0_i32_0 = arith.constant 0 : i32
    %c0_i32_1 = arith.constant 0 : i32
    %c0_i32_2 = arith.constant 0 : i32
    return %c0_i32, %c0_i32_0, %c0_i32_1 : i32, i32, i32
  }
  func.func @transform_2(%arg0: i32) -> (i32, i32) {
    %c0_i32 = arith.constant 0 : i32
    %c0_i32_0 = arith.constant 0 : i32
    %c0_i32_1 = arith.constant 0 : i32
    return %c0_i32, %c0_i32_0 : i32, i32
  }
  func.func @transform_3(%arg0: i32) -> (i32, i32, i32) {
    %c0_i32 = arith.constant 0 : i32
    %c0_i32_0 = arith.constant 0 : i32
    %c0_i32_1 = arith.constant 0 : i32
    return %arg0, %c0_i32, %c0_i32_0 : i32, i32, i32
  }
}

</mosaic_0001>

<llo_original>
// kernel: tpu_custom_call.1
$region0: #{tpu_custom_call.1}
  #allocation0 [shape = 'u32[]', space=smem, size = 0x4, offset = 0x4, fixed_abs, tag = 'smem constant byte address 0x4 - core index']
  #allocation1 [shape = 'u32[72,128]{1,0:T(1,128)}', space=vmem, size = 0x9000, scoped, tag = 'internal scratch']
  #allocation2 [shape = 'f32[18,128]{1,0:T(8,128)}', space=vmem, size = 0x3000, scoped, tag = 'scratch operand']
  %s0 = inlined_call_operand.hbm [shape: bf16[2,16,128], index: 0, kind: input, shape index: {}]
  %s1 = inlined_call_operand.hbm [shape: bf16[3,128,128], index: 1, kind: input, shape index: {}]
  %s2 = inlined_call_operand.vmem [shape: f32[1,128], index: 2, kind: input, shape index: {}]
  %s3 = inlined_call_operand.hbm [shape: f32[2,16,128], index: 3, kind: output, shape index: {}]
  %s4 = sld [smem:[#allocation0]]
  $region53: #{tpu_custom_call.1} parent=0
    _
  %s6 = ssub.s32 1, %s4
  %s7 = scalar_select 0, %s6, %s4
  $region1: #{tpu_custom_call.1} parent=0
    #allocation3 [shape = 'u8[8192]{0}', space=vmem, size = 0x2000, scoped, tag = 'input window, operand 0']
    #allocation4 [shape = 's32[2]{0}', space=sflag, size = 0x8, scoped, tag = 'scoped memory for tpu_custom_call.1']
    #allocation5 [shape = 's32[2]{0}', space=sflag, size = 0x8, scoped, tag = 'scoped memory for tpu_custom_call.1']
    #allocation6 [shape = 'u8[98304]{0}', space=vmem, size = 0x18000, scoped, tag = 'input window, operand 1, single buffered']
    #allocation7 [shape = 's32[1]{0}', space=sflag, size = 0x4, scoped, tag = 'scoped memory for tpu_custom_call.1']
    #allocation8 [shape = 'u8[16384]{0}', space=vmem, size = 0x4000, scoped, tag = 'output window, operand 0']
    %8 = vsyncpa [#allocation4], 0
    %s9 = scalar_lea.sflag [#allocation4], 1
    %10 = vsyncpa %s9, 0
    %11 = vsyncpa [#allocation7], 0
    %12 = vsyncpa [#allocation5], 0
    %s13 = scalar_lea.sflag [#allocation5], 1
    %14 = vsyncpa %s13, 0
    loop: start=0, step=1, limit=4
    $region2: #{tpu_custom_call.1} parent=1 // loop_pre_header
      _
    $region3: #{tpu_custom_call.1} parent=1 // loop_header
      %s16 = sphi 0, %s20
      %p17 = scmp.ge.s32.totalorder %s16, 4
      %s26 = sphi 0, %s28
      %s29 = sphi 0, %s26
      %s30 = sphi 0, %s29
      %s46 = sphi 0, %s30
      %s50 = sphi 0, %s50
      %s52 = sphi 0, %s50
      %s53 = sphi 0, %s52
      %s67 = sphi 0, %s53
      %s71 = sphi 0, %s71
      %s73 = sphi 0, %s71
      %s74 = sphi 0, %s73
      %s88 = sphi 0, %s74
      %s94 = sphi 0, %s96
      %s97 = sphi 0, %s94
      %s98 = sphi 0, %s97
      %s114 = sphi 0, %s98
    $region4: #{tpu_custom_call.1} parent=1 // loop_header_branch
      %19 = sbr.rel (%p17) target = $region8
    $region5: #{tpu_custom_call.1} parent=1 // loop_body
      %s21 = ssub.s32 %s16, 1
      %s22 = ssub.s32 %s16, 2
      %s23 = sadd.s32 %s16, 1
      %s24 = ssub.s32 %s16, %s23
      %p25 = scmp.eq.s32.totalorder %s24, 0
      %s27 = sadd.s32 %s26, 1
      %s28 = scalar_select %p25, %s26, %s27
      %p31 = pneg %p25
      %p32 = scmp.eq.s32.totalorder %s16, 1
      %p33 = por %p31, %p32
      %p34 = scmp.ne.s32.totalorder %s26, %s29
      %p35 = scmp.eq.s32.totalorder %s16, 0
      %p36 = por %p34, %p35
      %p37 = scmp.ne.s32.totalorder %s26, %s29
      %p38 = scmp.eq.s32.totalorder %s21, 1
      %p39 = por %p37, %p38
      %p40 = scmp.ne.s32.totalorder %s29, %s30
      %p41 = scmp.eq.s32.totalorder %s21, 0
      %p42 = por %p40, %p41
      %p43 = scmp.ne.s32.totalorder %s29, %s30
      %p44 = scmp.eq.s32.totalorder %s22, 1
      %p45 = por %p43, %p44
      %p47 = scmp.ne.s32.totalorder %s30, %s46
      %p48 = scmp.eq.s32.totalorder %s22, 0
      %p49 = por %p47, %p48
      %s51 = sadd.s32 %s50, 1
      %p54 = scmp.eq.s32.totalorder %s16, 1
      %p55 = scmp.ne.s32.totalorder %s50, %s52
      %p56 = scmp.eq.s32.totalorder %s16, 0
      %p57 = por %p55, %p56
      %p58 = scmp.ne.s32.totalorder %s50, %s52
      %p59 = scmp.eq.s32.totalorder %s21, 1
      %p60 = por %p58, %p59
      %p61 = scmp.ne.s32.totalorder %s52, %s53
      %p62 = scmp.eq.s32.totalorder %s21, 0
      %p63 = por %p61, %p62
      %p64 = scmp.ne.s32.totalorder %s52, %s53
      %p65 = scmp.eq.s32.totalorder %s22, 1
      %p66 = por %p64, %p65
      %p68 = scmp.ne.s32.totalorder %s53, %s67
      %p69 = scmp.eq.s32.totalorder %s22, 0
      %p70 = por %p68, %p69
      %s72 = sadd.s32 %s71, 1
      %p75 = scmp.eq.s32.totalorder %s16, 1
      %p76 = scmp.ne.s32.totalorder %s71, %s73
      %p77 = scmp.eq.s32.totalorder %s16, 0
      %p78 = por %p76, %p77
      %p79 = scmp.ne.s32.totalorder %s71, %s73
      %p80 = scmp.eq.s32.totalorder %s21, 1
      %p81 = por %p79, %p80
      %p82 = scmp.ne.s32.totalorder %s73, %s74
      %p83 = scmp.eq.s32.totalorder %s21, 0
      %p84 = por %p82, %p83
      %p85 = scmp.ne.s32.totalorder %s73, %s74
      %p86 = scmp.eq.s32.totalorder %s22, 1
      %p87 = por %p85, %p86
      %p89 = scmp.ne.s32.totalorder %s74, %s88
      %p90 = scmp.eq.s32.totalorder %s22, 0
      %p91 = por %p89, %p90
      %s92 = ssub.s32 %s16, %s23
      %p93 = scmp.eq.s32.totalorder %s92, 0
      %s95 = sadd.s32 %s94, 1
      %s96 = scalar_select %p93, %s94, %s95
      %p99 = pneg %p93
      %p100 = scmp.eq.s32.totalorder %s16, 1
      %p101 = por %p99, %p100
      %p102 = scmp.ne.s32.totalorder %s94, %s97
      %p103 = scmp.eq.s32.totalorder %s16, 0
      %p104 = por %p102, %p103
      %p105 = scmp.ne.s32.totalorder %s94, %s97
      %p106 = scmp.eq.s32.totalorder %s21, 1
      %p107 = por %p105, %p106
      %p108 = scmp.ne.s32.totalorder %s97, %s98
      %p109 = scmp.eq.s32.totalorder %s21, 0
      %p110 = por %p108, %p109
      %p111 = scmp.ne.s32.totalorder %s97, %s98
      %p112 = scmp.eq.s32.totalorder %s22, 1
      %p113 = por %p111, %p112
      %p115 = scmp.ne.s32.totalorder %s98, %s114
      %p116 = scmp.eq.s32.totalorder %s22, 0
      %p117 = por %p115, %p116
      %p118 = scmp.le.s32.totalorder 1, %s16
      %p119 = scmp.lt.s32.totalorder %s16, 3
      %p120 = pnand %p118, %p119
      %p121 = pneg %p120
      // Predicated region
      $region9: #{tpu_custom_call.1} parent=5 // pred_check
        _
      $region10: #{tpu_custom_call.1} parent=5 // pred_check_branch
        %123 = sbr.rel (%p120) target = $region12
      $region11: #{tpu_custom_call.1} parent=5 // pred_region
        %s124 = ssub.s32 %s16, 1
        // Predicated region
        $region13: #{tpu_custom_call.1} parent=11 // pred_check
          %p125 = pneg %p63
        $region14: #{tpu_custom_call.1} parent=11 // pred_check_branch
          %127 = sbr.rel (%p125) target = $region16
        $region15: #{tpu_custom_call.1} parent=11 // pred_region
          %129 = vsyncadd [#allocation7], 0
          %s130 = sshll.u32 %s1, 4
          %s131 = int_to_ptr.hbm [resolvable:$true] %s130
          %s132 = sshll.u32 [#allocation6], 4
          %s133 = int_to_ptr.vmem [resolvable:$true] %s132
          %138 = dma.hbm_to_vmem [thread:$0]  %s131, 3072, %s133, [#allocation7], 64, 64, 4
        $region16: #{tpu_custom_call.1} parent=11 // pred_fallthru
          _
        // Predicated region
        $region17: #{tpu_custom_call.1} parent=11 // pred_check
          %p139 = pneg %p84
        $region18: #{tpu_custom_call.1} parent=11 // pred_check_branch
          %141 = sbr.rel (%p139) target = $region20
        $region19: #{tpu_custom_call.1} parent=11 // pred_region
          _
        $region20: #{tpu_custom_call.1} parent=11 // pred_fallthru
          _
      $region12: #{tpu_custom_call.1} parent=5 // pred_fallthru
        _
      %p142 = scmp.lt.s32.totalorder %s16, 2
      // Predicated region
      $region21: #{tpu_custom_call.1} parent=5 // pred_check
        %p143 = pneg %p142
      $region22: #{tpu_custom_call.1} parent=5 // pred_check_branch
        %145 = sbr.rel (%p143) target = $region24
      $region23: #{tpu_custom_call.1} parent=5 // pred_region
        // Predicated region
        $region25: #{tpu_custom_call.1} parent=23 // pred_check
          %p146 = pneg %p36
        $region26: #{tpu_custom_call.1} parent=23 // pred_check_branch
          %148 = sbr.rel (%p146) target = $region28
        $region27: #{tpu_custom_call.1} parent=23 // pred_region
          %s149 = sand.u32 %s26, 1
          %s150 = scalar_lea.sflag [#allocation4], %s149
          %s151 = sand.u32 %s26, 1
          %s152 = smul.addr %s151, 8
          %s153 = scalar_lea.vmem [#allocation3], %s152
          %155 = vsyncadd %s150, 0
          %s156 = smul.addr %s16, 2
          %s157 = smul.addr %s156, 4
          %s158 = scalar_lea.hbm %s0, %s157
          %s159 = sshll.u32 %s158, 4
          %s160 = int_to_ptr.hbm [resolvable:$true] %s159
          %s161 = sshll.u32 %s153, 4
          %s162 = int_to_ptr.vmem [resolvable:$true] %s161
          %167 = dma.hbm_to_vmem [thread:$0]  %s160, 128, %s162, %s150, 64, 64, 4
        $region28: #{tpu_custom_call.1} parent=23 // pred_fallthru
          _
      $region24: #{tpu_custom_call.1} parent=5 // pred_fallthru
        _
      %p168 = scmp.le.s32.totalorder 1, %s16
      %p169 = scmp.lt.s32.totalorder %s16, 3
      %p170 = pnand %p168, %p169
      %p171 = pneg %p170
      // Predicated region
      $region29: #{tpu_custom_call.1} parent=5 // pred_check
        _
      $region30: #{tpu_custom_call.1} parent=5 // pred_check_branch
        %173 = sbr.rel (%p170) target = $region32
      $region31: #{tpu_custom_call.1} parent=5 // pred_region
        %s174 = ssub.s32 %s16, 1
        %s175 = sand.u32 %s29, 1
        %s176 = scalar_lea.sflag [#allocation4], %s175
        %s177 = sand.u32 %s29, 1
        %s178 = smul.addr %s177, 8
        %s179 = scalar_lea.vmem [#allocation3], %s178
        // Predicated region
        $region33: #{tpu_custom_call.1} parent=31 // pred_check
          %p180 = pneg %p42
        $region34: #{tpu_custom_call.1} parent=31 // pred_check_branch
          %182 = sbr.rel (%p180) target = $region36
        $region35: #{tpu_custom_call.1} parent=31 // pred_region
          %184 = dma.done %s176, 128
        $region36: #{tpu_custom_call.1} parent=31 // pred_fallthru
          _
        // Predicated region
        $region37: #{tpu_custom_call.1} parent=31 // pred_check
          %p185 = pneg %p63
        $region38: #{tpu_custom_call.1} parent=31 // pred_check_branch
          %187 = sbr.rel (%p185) target = $region40
        $region39: #{tpu_custom_call.1} parent=31 // pred_region
          %189 = dma.done [#allocation7], 3072
        $region40: #{tpu_custom_call.1} parent=31 // pred_fallthru
          _
        %s190 = sand.u32 %s29, 1
        %s191 = scalar_lea.sflag [#allocation4], %s190
        %s192 = sand.u32 %s29, 1
        %s193 = smul.addr %s192, 8
        %s194 = scalar_lea.vmem [#allocation3], %s193
        %p195 = pneg %p42
        %p196 = pneg %p39
        %p197 = pneg %p63
        %p198 = pneg %p60
        %p199 = pneg %p84
        %p200 = pneg %p81
        %p201 = pneg %p110
        %p202 = pneg %p107
        %s203 = sand.u32 %s97, 1
        %s204 = scalar_lea.sflag [#allocation5], %s203
        %s205 = sand.u32 %s97, 1
        %s206 = smul.addr %s205, 16
        %s207 = scalar_lea.vmem [#allocation8], %s206
        %208 = vst [vmem:[#allocation2] sm:$0x1] 0.0
        %209 = vst [vmem:[#allocation2 + $0x11] sm:$0x1] 0.0
        %v210 = vld [vmem:[%s179] sm:$0xf]
        %v211 = vld [vmem:[%s179 + $0x4] sm:$0xf]
        %v212 = vunpack.c.l.bf16 %v210
        %v213 = vunpack.c.l.bf16 %v211
        %214 = vst [vmem:[#allocation2 + $0x1] sm:$0xff] %v212
        %215 = vst [vmem:[#allocation2 + $0x9] sm:$0xff] %v213
        %v216 = vld [vmem:[#allocation2] sm:$0xff]
        %v217 = vld [vmem:[#allocation2 + $0x8] sm:$0xff]
        %v218 = vpack.c.bf16 %v217, %v216
        %v219 = vld [vmem:[#allocation6] sm:$0xf]
        %v220 = vld [vmem:[#allocation6 + $0x4] sm:$0xf]
        %v221 = vld [vmem:[#allocation6 + $0x8] sm:$0xf]
        %v222 = vld [vmem:[#allocation6 + $0xc] sm:$0xf]
        %v223 = vld [vmem:[#allocation6 + $0x10] sm:$0xf]
        %v224 = vld [vmem:[#allocation6 + $0x14] sm:$0xf]
        %v225 = vld [vmem:[#allocation6 + $0x18] sm:$0xf]
        %v226 = vld [vmem:[#allocation6 + $0x1c] sm:$0xf]
        %v227 = vld [vmem:[#allocation6 + $0x20] sm:$0xf]
        %v228 = vld [vmem:[#allocation6 + $0x24] sm:$0xf]
        %v229 = vld [vmem:[#allocation6 + $0x28] sm:$0xf]
        %v230 = vld [vmem:[#allocation6 + $0x2c] sm:$0xf]
        %v231 = vld [vmem:[#allocation6 + $0x30] sm:$0xf]
        %v232 = vld [vmem:[#allocation6 + $0x34] sm:$0xf]
        %v233 = vld [vmem:[#allocation6 + $0x38] sm:$0xf]
        %v234 = vld [vmem:[#allocation6 + $0x3c] sm:$0xf]
        %v235 = vld [vmem:[#allocation2 + $0x1] sm:$0xff]
        %v236 = vld [vmem:[#allocation2 + $0x9] sm:$0xff]
        %v237 = vpack.c.bf16 %v236, %v235
        %s238 = scalar_lea.vmem [#allocation6], 64
        %v239 = vld [vmem:[%s238] sm:$0xf]
        %v240 = vld [vmem:[%s238 + $0x4] sm:$0xf]
        %v241 = vld [vmem:[%s238 + $0x8] sm:$0xf]
        %v242 = vld [vmem:[%s238 + $0xc] sm:$0xf]
        %v243 = vld [vmem:[%s238 + $0x10] sm:$0xf]
        %v244 = vld [vmem:[%s238 + $0x14] sm:$0xf]
        %v245 = vld [vmem:[%s238 + $0x18] sm:$0xf]
        %v246 = vld [vmem:[%s238 + $0x1c] sm:$0xf]
        %v247 = vld [vmem:[%s238 + $0x20] sm:$0xf]
        %v248 = vld [vmem:[%s238 + $0x24] sm:$0xf]
        %v249 = vld [vmem:[%s238 + $0x28] sm:$0xf]
        %v250 = vld [vmem:[%s238 + $0x2c] sm:$0xf]
        %v251 = vld [vmem:[%s238 + $0x30] sm:$0xf]
        %v252 = vld [vmem:[%s238 + $0x34] sm:$0xf]
        %v253 = vld [vmem:[%s238 + $0x38] sm:$0xf]
        %v254 = vld [vmem:[%s238 + $0x3c] sm:$0xf]
        %v271 = vunpack.c.l.b16 %v239
        %v272 = vunpack.c.l.b16 %v240
        %v273 = vunpack.c.l.b16 %v241
        %v274 = vunpack.c.l.b16 %v242
        %v275 = vunpack.c.l.b16 %v243
        %v276 = vunpack.c.l.b16 %v244
        %v277 = vunpack.c.l.b16 %v245
        %v278 = vunpack.c.l.b16 %v246
        %v279 = vunpack.c.l.b16 %v247
        %v280 = vunpack.c.l.b16 %v248
        %v281 = vunpack.c.l.b16 %v249
        %v282 = vunpack.c.l.b16 %v250
        %v283 = vunpack.c.l.b16 %v251
        %v284 = vunpack.c.l.b16 %v252
        %v285 = vunpack.c.l.b16 %v253
        %v286 = vunpack.c.l.b16 %v254
        %v287 = vpack.c.b16 %v272, %v271
        %v288 = vpack.c.b16 %v274, %v273
        %v289 = vpack.c.b16 %v276, %v275
        %v290 = vpack.c.b16 %v278, %v277
        %v291 = vpack.c.b16 %v280, %v279
        %v292 = vpack.c.b16 %v282, %v281
        %v293 = vpack.c.b16 %v284, %v283
        %v294 = vpack.c.b16 %v286, %v285
        %303 = vmatpush.bf16.msra.mxu0 %v294
        %304 = vmatpush.bf16.msra.mxu0 %v293
        %305 = vmatpush.bf16.msra.mxu0 %v292
        %306 = vmatpush.bf16.msra.mxu0 %v291
        %307 = vmatpush.bf16.msra.mxu0 %v290
        %308 = vmatpush.bf16.msra.mxu0 %v289
        %309 = vmatpush.bf16.msra.mxu0 %v288
        %310 = vmatpush.bf16.msra.mxu0 %v287
        %311 = vmatmul.bf16.gmra.mxu0 %v237
        %v312 = vpop.f32.mrf.mxu0
        %v313 = vadd.f32 0.0, %v312
        %v314 = vpop.f32.mrf.mxu0
        %v315 = vadd.f32 0.0, %v314
        %316 = vdwg.mxu0
        %v333 = vunpack.c.l.b16 %v219
        %v334 = vunpack.c.l.b16 %v220
        %v335 = vunpack.c.l.b16 %v221
        %v336 = vunpack.c.l.b16 %v222
        %v337 = vunpack.c.l.b16 %v223
        %v338 = vunpack.c.l.b16 %v224
        %v339 = vunpack.c.l.b16 %v225
        %v340 = vunpack.c.l.b16 %v226
        %v341 = vunpack.c.l.b16 %v227
        %v342 = vunpack.c.l.b16 %v228
        %v343 = vunpack.c.l.b16 %v229
        %v344 = vunpack.c.l.b16 %v230
        %v345 = vunpack.c.l.b16 %v231
        %v346 = vunpack.c.l.b16 %v232
        %v347 = vunpack.c.l.b16 %v233
        %v348 = vunpack.c.l.b16 %v234
        %v349 = vpack.c.b16 %v334, %v333
        %v350 = vpack.c.b16 %v336, %v335
        %v351 = vpack.c.b16 %v338, %v337
        %v352 = vpack.c.b16 %v340, %v339
        %v353 = vpack.c.b16 %v342, %v341
        %v354 = vpack.c.b16 %v344, %v343
        %v355 = vpack.c.b16 %v346, %v345
        %v356 = vpack.c.b16 %v348, %v347
        %365 = vmatpush.bf16.msra.mxu0 %v356
        %366 = vmatpush.bf16.msra.mxu0 %v355
        %367 = vmatpush.bf16.msra.mxu0 %v354
        %368 = vmatpush.bf16.msra.mxu0 %v353
        %369 = vmatpush.bf16.msra.mxu0 %v352
        %370 = vmatpush.bf16.msra.mxu0 %v351
        %371 = vmatpush.bf16.msra.mxu0 %v350
        %372 = vmatpush.bf16.msra.mxu0 %v349
        %373 = vmatmul.bf16.gmra.mxu0 %v218
        %v374 = vpop.f32.mrf.mxu0
        %v375 = vadd.f32 %v313, %v374
        %v376 = vpop.f32.mrf.mxu0
        %v377 = vadd.f32 %v315, %v376
        %378 = vdwg.mxu0
        %v379 = vld [vmem:[#allocation2 + $0x2] sm:$0xff]
        %v380 = vld [vmem:[#allocation2 + $0xa] sm:$0xff]
        %v381 = vpack.c.bf16 %v380, %v379
        %s382 = scalar_lea.vmem [#allocation6], 128
        %v383 = vld [vmem:[%s382] sm:$0xf]
        %v384 = vld [vmem:[%s382 + $0x4] sm:$0xf]
        %v385 = vld [vmem:[%s382 + $0x8] sm:$0xf]
        %v386 = vld [vmem:[%s382 + $0xc] sm:$0xf]
        %v387 = vld [vmem:[%s382 + $0x10] sm:$0xf]
        %v388 = vld [vmem:[%s382 + $0x14] sm:$0xf]
        %v389 = vld [vmem:[%s382 + $0x18] sm:$0xf]
        %v390 = vld [vmem:[%s382 + $0x1c] sm:$0xf]
        %v391 = vld [vmem:[%s382 + $0x20] sm:$0xf]
        %v392 = vld [vmem:[%s382 + $0x24] sm:$0xf]
        %v393 = vld [vmem:[%s382 + $0x28] sm:$0xf]
        %v394 = vld [vmem:[%s382 + $0x2c] sm:$0xf]
        %v395 = vld [vmem:[%s382 + $0x30] sm:$0xf]
        %v396 = vld [vmem:[%s382 + $0x34] sm:$0xf]
        %v397 = vld [vmem:[%s382 + $0x38] sm:$0xf]
        %v398 = vld [vmem:[%s382 + $0x3c] sm:$0xf]
        %v415 = vunpack.c.l.b16 %v383
        %v416 = vunpack.c.l.b16 %v384
        %v417 = vunpack.c.l.b16 %v385
        %v418 = vunpack.c.l.b16 %v386
        %v419 = vunpack.c.l.b16 %v387
        %v420 = vunpack.c.l.b16 %v388
        %v421 = vunpack.c.l.b16 %v389
        %v422 = vunpack.c.l.b16 %v390
        %v423 = vunpack.c.l.b16 %v391
        %v424 = vunpack.c.l.b16 %v392
        %v425 = vunpack.c.l.b16 %v393
        %v426 = vunpack.c.l.b16 %v394
        %v427 = vunpack.c.l.b16 %v395
        %v428 = vunpack.c.l.b16 %v396
        %v429 = vunpack.c.l.b16 %v397
        %v430 = vunpack.c.l.b16 %v398
        %v431 = vpack.c.b16 %v416, %v415
        %v432 = vpack.c.b16 %v418, %v417
        %v433 = vpack.c.b16 %v420, %v419
        %v434 = vpack.c.b16 %v422, %v421
        %v435 = vpack.c.b16 %v424, %v423
        %v436 = vpack.c.b16 %v426, %v425
        %v437 = vpack.c.b16 %v428, %v427
        %v438 = vpack.c.b16 %v430, %v429
        %447 = vmatpush.bf16.msra.mxu0 %v438
        %448 = vmatpush.bf16.msra.mxu0 %v437
        %449 = vmatpush.bf16.msra.mxu0 %v436
        %450 = vmatpush.bf16.msra.mxu0 %v435
        %451 = vmatpush.bf16.msra.mxu0 %v434
        %452 = vmatpush.bf16.msra.mxu0 %v433
        %453 = vmatpush.bf16.msra.mxu0 %v432
        %454 = vmatpush.bf16.msra.mxu0 %v431
        %455 = vmatmul.bf16.gmra.mxu0 %v381
        %v456 = vpop.f32.mrf.mxu0
        %v457 = vadd.f32 0.0, %v456
        %v458 = vpop.f32.mrf.mxu0
        %v459 = vadd.f32 0.0, %v458
        %460 = vdwg.mxu0
        %v461 = vadd.f32 %v375, %v457
        %v462 = vadd.f32 %v377, %v459
        %v463 = vld [vmem:[%s2] sm:$0x1]
        %v465 = vperm.slane %v463, 0
        %v467 = vadd.f32 %v461, %v465
        %v468 = vadd.f32 %v462, %v465
        %v469 = vmax.f32 %v467, 0.0
        %v470 = vmax.f32 %v468, 0.0
        %471 = vst [vmem:[%s207] sm:$0xff] %v469
        %472 = vst [vmem:[%s207 + $0x8] sm:$0xff] %v470
        %s473 = sand.u32 %s97, 1
        %s474 = scalar_lea.sflag [#allocation5], %s473
        %s475 = sand.u32 %s97, 1
        %s476 = smul.addr %s475, 16
        %s477 = scalar_lea.vmem [#allocation8], %s476
        // Predicated region
        $region41: #{tpu_custom_call.1} parent=31 // pred_check
          %p478 = pneg %p107
        $region42: #{tpu_custom_call.1} parent=31 // pred_check_branch
          %480 = sbr.rel (%p478) target = $region44
        $region43: #{tpu_custom_call.1} parent=31 // pred_region
          %482 = vsyncadd %s474, 0
          %s483 = smul.addr %s21, 2
          %s484 = smul.addr %s483, 8
          %s485 = scalar_lea.hbm %s3, %s484
          %s486 = sshll.u32 %s477, 4
          %s487 = int_to_ptr.vmem [resolvable:$true] %s486
          %s488 = sshll.u32 %s485, 4
          %s489 = int_to_ptr.hbm [resolvable:$true] %s488
          %494 = dma.vmem_to_hbm [thread:$0]  %s487, 256, %s489, %s474, 128, 128, 8
        $region44: #{tpu_custom_call.1} parent=31 // pred_fallthru
          _
      $region32: #{tpu_custom_call.1} parent=5 // pred_fallthru
        _
      %p495 = scmp.le.s32.totalorder 2, %s16
      // Predicated region
      $region45: #{tpu_custom_call.1} parent=5 // pred_check
        %p496 = pneg %p495
      $region46: #{tpu_custom_call.1} parent=5 // pred_check_branch
        %498 = sbr.rel (%p496) target = $region48
      $region47: #{tpu_custom_call.1} parent=5 // pred_region
        %s499 = ssub.s32 %s16, 2
        // Predicated region
        $region49: #{tpu_custom_call.1} parent=47 // pred_check
          %p500 = pneg %p113
        $region50: #{tpu_custom_call.1} parent=47 // pred_check_branch
          %502 = sbr.rel (%p500) target = $region52
        $region51: #{tpu_custom_call.1} parent=47 // pred_region
          %s503 = sand.u32 %s98, 1
          %s504 = scalar_lea.sflag [#allocation5], %s503
          %s505 = sand.u32 %s98, 1
          %s506 = smul.addr %s505, 16
          %s507 = scalar_lea.vmem [#allocation8], %s506
          %509 = dma.done %s504, 256
        $region52: #{tpu_custom_call.1} parent=47 // pred_fallthru
          _
      $region48: #{tpu_custom_call.1} parent=5 // pred_fallthru
        _
    $region6: #{tpu_custom_call.1} parent=1 // loop_footer
      %s20 = sadd.s32 1, %s16
    $region7: #{tpu_custom_call.1} parent=1 // loop_footer_branch
      %15 = sbr.rel target = $region3
    $region8: #{tpu_custom_call.1} parent=1 // loop_exit
      _
    %510 = vsyncpa [#allocation4], 1
    %s511 = scalar_lea.sflag [#allocation4], 1
    %512 = vsyncpa %s511, 1
    %513 = vsyncpa [#allocation7], 1
    %514 = vsyncpa [#allocation5], 1
    %s515 = scalar_lea.sflag [#allocation5], 1
    %516 = vsyncpa %s515, 1

</llo_original>
